<compile_context>
chip_gen: v6e
topology: v6e:2x2x1
jax: 0.10.0
libtpu: 0.0.40
codegen_flags: <defaults>
</compile_context>

<pallas_src>
import functools

import jax
import jax.numpy as jnp
from jax.experimental import pallas as pl
from jax.experimental.pallas import tpu as pltpu


def _round_up(a: int, m: int) -> int:
    return (a + m - 1) // m * m


@functools.lru_cache(maxsize=1)
def _vmem_capacity_bytes() -> int:
    try:
        return int(pltpu.get_tpu_info().vmem_capacity_bytes)
    except Exception:
        return 64 << 20  # conservative fallback (v7x per-TensorCore VMEM)


# ----------------------------------------------------------------------------- kernels


def _layer_norm(z, gamma_f32, beta_f32, d_true, d_pad, eps):
    """Masked LayerNorm over the last axis using the *true* d_model."""
    inv_d = 1.0 / float(d_true)
    mean = jnp.sum(z, axis=-1, keepdims=True) * inv_d
    zc = z - mean
    if d_pad != d_true:
        lane = jax.lax.broadcasted_iota(jnp.int32, zc.shape, 1)
        zc = jnp.where(lane < d_true, zc, 0.0)
    var = jnp.sum(zc * zc, axis=-1, keepdims=True) * inv_d
    inv = jax.lax.rsqrt(var + eps)
    return zc * inv * gamma_f32 + beta_f32


def _make_resident_kernel(d_true, d_pad, eps, compute_dtype):
    """Weights fully resident in VMEM; 1-D grid over row tiles."""

    def kernel(x_ref, w1_ref, w2_ref, g_ref, b_ref, o_ref):
        x = x_ref[...]
        xc = x.astype(compute_dtype)
        h = jnp.dot(xc, w1_ref[...], preferred_element_type=jnp.float32)
        h = jnp.maximum(h, 0.0)  # ReLU
        z = jnp.dot(h.astype(compute_dtype), w2_ref[...],
                    preferred_element_type=jnp.float32)
        z = z + x.astype(jnp.float32)  # residual in f32
        out = _layer_norm(z, g_ref[...].astype(jnp.float32),
                          b_ref[...].astype(jnp.float32), d_true, d_pad, eps)
        o_ref[...] = out.astype(o_ref.dtype)

    return kernel


def _make_streamed_kernel(d_true, d_pad, eps, compute_dtype):
    """d_ffn streamed over the innermost grid axis with an f32 accumulator."""

    def kernel(x_ref, w1_ref, w2_ref, g_ref, b_ref, o_ref, acc_ref):
        k = pl.program_id(1)

        @pl.when(k == 0)
        def _init():
            acc_ref[...] = jnp.zeros_like(acc_ref)

        x = x_ref[...]
        xc = x.astype(compute_dtype)
        h = jnp.dot(xc, w1_ref[...], preferred_element_type=jnp.float32)
        h = jnp.maximum(h, 0.0)
        acc_ref[...] += jnp.dot(h.astype(compute_dtype), w2_ref[...],
                                preferred_element_type=jnp.float32)

        @pl.when(k == pl.num_programs(1) - 1)
        def _finalize():
            z = acc_ref[...] + x.astype(jnp.float32)
            out = _layer_norm(z, g_ref[...].astype(jnp.float32),
                              b_ref[...].astype(jnp.float32), d_true, d_pad, eps)
            o_ref[...] = out.astype(o_ref.dtype)

    return kernel


# -------------------------------------------------------------------- tile/mode choice


def _select_config(M, D, d_ffn, x_dtype, w_dtype, out_dtype, compute_dtype,
                   force_streamed=False, block_ffn=None):
    xb = jnp.dtype(x_dtype).itemsize
    wb = jnp.dtype(w_dtype).itemsize
    ob = jnp.dtype(out_dtype).itemsize
    cb = jnp.dtype(compute_dtype).itemsize

    D_pad = _round_up(D, 128)
    F_base = _round_up(d_ffn, 128)

    sub = 8 if xb >= 4 else (16 if xb == 2 else 32)
    M_sub = _round_up(M, sub)

    vmem_cap = _vmem_capacity_bytes()
    budget = int(vmem_cap * 0.80)  # leave pipeline/compiler headroom

    base = (2048, 1536, 1024, 768, 512, 384, 256, 128, 64, 32, 16, 8)
    tm_cands = sorted({min(_round_up(c, sub), M_sub) for c in base}, reverse=True)

    def fp_resident(tm):
        return (2 * tm * D_pad * (xb + ob)          # x / out tiles (double-buffered)
                + 4 * D_pad * F_base * wb           # W1 + W2 (count 2 buffers each)
                + tm * F_base * (4 + cb)            # h (f32) + cast for second matmul
                + tm * D_pad * 4                    # z / LayerNorm temporaries
                + 4 * D_pad * 4)                    # gamma / beta

    def fp_streamed(tm, tk):
        return (2 * tm * D_pad * (xb + ob)
                + tm * D_pad * 4                    # f32 accumulator scratch
                + 4 * D_pad * tk * wb               # W1/W2 slices (double-buffered)
                + tm * tk * (4 + cb)                # h slice (f32) + cast
                + tm * D_pad * 4                    # finalize temporaries
                + 4 * D_pad * 4)

    if not force_streamed:
        feas = [tm for tm in tm_cands if fp_resident(tm) <= budget]
        if feas and max(feas) >= min(256, M_sub):
            # Minimize padded-row waste; at equal waste prefer >=2 row tiles so the
            # 'parallel' axis can use both v7x TensorCores; then the largest tile.
            def key_a(tm):
                m_pad = _round_up(M, tm)
                return (m_pad, 0 if (m_pad // tm) >= 2 else 1, -tm)

            tm = min(feas, key=key_a)
            return dict(mode="resident", tm=tm, tk=F_base, D_pad=D_pad, F_pad=F_base,
                        M_pad=_round_up(M, tm), footprint=fp_resident(tm),
                        vmem_cap=vmem_cap)

    if block_ffn is not None:
        tk_cands = [min(_round_up(block_ffn, 128), F_base)]
    else:
        tk_cands = sorted({min(c, F_base) for c in (2048, 1024, 512, 256, 128)},
                          reverse=True)

    best = None
    for tk in tk_cands:
        for tm in tm_cands:
            if fp_streamed(tm, tk) > budget:
                continue
            # Minimize padded waste, then maximize tm (weight re-streams ∝ M_pad/tm),
            # then maximize tk (fewer accumulator read-modify-write passes / k steps).
            score = (_round_up(M, tm), -tm, -tk)
            if best is None or score < best[0]:
                best = (score, tm, tk)
    if best is None:                      # nothing fits the budget: smallest tiles
        tm, tk = min(tm_cands), min(tk_cands)
    else:
        _, tm, tk = best

    F_pad = _round_up(F_base, tk)
    return dict(mode="streamed", tm=tm, tk=tk, D_pad=D_pad, F_pad=F_pad,
                M_pad=_round_up(M, tm), footprint=fp_streamed(tm, tk),
                vmem_cap=vmem_cap)


# ----------------------------------------------------------------------------- wrapper


@functools.partial(jax.jit,
                   static_argnames=("use_bf16_matmul", "force_streamed",
                                    "block_ffn", "eps"))
def position_wise_ffn(x, w1, w2, gamma, beta, *,
                      use_bf16_matmul: bool = True,
                      force_streamed: bool = False,
                      block_ffn: int | None = None,
                      eps: float = 1e-5):
    """x: [batch, seq, d_model] -> LayerNorm(ReLU(x@W1)@W2 + x): [batch, seq, d_model]."""
    B, S, D = x.shape
    d_ffn = w1.shape[1]
    M = B * S

    # MXU operand dtype: bf16 operands + f32 accumulation recovers ~3-4x MXU throughput
    # for f32 inputs on all generations.  Residual / LayerNorm math stays f32.
    if use_bf16_matmul and x.dtype == jnp.float32:
        compute_dtype = jnp.bfloat16
    else:
        compute_dtype = x.dtype
    w_dtype = compute_dtype

    cfg = _select_config(M, D, d_ffn, x.dtype, w_dtype, x.dtype, compute_dtype,
                         force_streamed=force_streamed, block_ffn=block_ffn)
    D_pad, F_pad, M_pad = cfg["D_pad"], cfg["F_pad"], cfg["M_pad"]
    tm, tk = cfg["tm"], cfg["tk"]
    n_row_tiles = M_pad // tm

    # --- pad inputs lane/sublane-dense (zeros never change masked LN stats) ----------
    x2d = x.reshape(M, D)
    if (M_pad, D_pad) != (M, D):
        x2d = jnp.pad(x2d, ((0, M_pad - M), (0, D_pad - D)))
    w1p = w1.astype(w_dtype)
    w2p = w2.astype(w_dtype)
    if (D_pad, F_pad) != (D, d_ffn):
        w1p = jnp.pad(w1p, ((0, D_pad - D), (0, F_pad - d_ffn)))
        w2p = jnp.pad(w2p, ((0, F_pad - d_ffn), (0, D_pad - D)))
    g2d = jnp.pad(gamma, (0, D_pad - D)).reshape(1, D_pad)
    b2d = jnp.pad(beta, (0, D_pad - D)).reshape(1, D_pad)

    # --- grid / kernel per mode -------------------------------------------------------
    if cfg["mode"] == "resident":
        kernel = _make_resident_kernel(D, D_pad, eps, compute_dtype)
        grid_spec = pltpu.PrefetchScalarGridSpec(
            num_scalar_prefetch=0,
            grid=(n_row_tiles,),
            in_specs=[
                pl.BlockSpec((tm, D_pad), lambda i: (i, 0)),     # x row tile
                pl.BlockSpec((D_pad, F_pad), lambda i: (0, 0)),  # W1 resident in VMEM
                pl.BlockSpec((F_pad, D_pad), lambda i: (0, 0)),  # W2 resident in VMEM
                pl.BlockSpec((1, D_pad), lambda i: (0, 0)),      # gamma
                pl.BlockSpec((1, D_pad), lambda i: (0, 0)),      # beta
            ],
            out_specs=pl.BlockSpec((tm, D_pad), lambda i: (i, 0)),
            scratch_shapes=[],
        )
        dim_sem = ("parallel",)
    else:
        kernel = _make_streamed_kernel(D, D_pad, eps, compute_dtype)
        grid_spec = pltpu.PrefetchScalarGridSpec(
            num_scalar_prefetch=0,
            grid=(n_row_tiles, F_pad // tk),
            in_specs=[
                pl.BlockSpec((tm, D_pad), lambda i, k: (i, 0)),  # x tile (reused over k)
                pl.BlockSpec((D_pad, tk), lambda i, k: (0, k)),  # W1 d_ffn slice
                pl.BlockSpec((tk, D_pad), lambda i, k: (k, 0)),  # W2 d_ffn slice
                pl.BlockSpec((1, D_pad), lambda i, k: (0, 0)),   # gamma
                pl.BlockSpec((1, D_pad), lambda i, k: (0, 0)),   # beta
                # NOTE: only if profiling shows exposed weight DMA should the W1/W2
                # specs get pipeline_mode=pl.Buffered(3); it costs VMEM we use for tm.
            ],
            out_specs=pl.BlockSpec((tm, D_pad), lambda i, k: (i, 0)),
            scratch_shapes=[pltpu.VMEM((tm, D_pad), jnp.float32)],
        )
        dim_sem = ("parallel", "arbitrary")

    # --- scheduler hint + explicit VMEM budget ----------------------------------------
    w_stream_passes = 1 if cfg["mode"] == "resident" else n_row_tiles
    cost = pl.CostEstimate(
        flops=4 * M_pad * D_pad * F_pad + 10 * M_pad * D_pad,
        transcendentals=M_pad,
        bytes_accessed=(x2d.size * x2d.dtype.itemsize                 # read x
                        + M_pad * D_pad * jnp.dtype(x.dtype).itemsize  # write out
                        + w_stream_passes * (w1p.size * w1p.dtype.itemsize
                                             + w2p.size * w2p.dtype.itemsize)
                        + 2 * D_pad * 4),
    )
    vmem_limit = int(min(cfg["vmem_cap"],
                         max(cfg["footprint"] + (8 << 20), 24 << 20)))

    out2d = pl.pallas_call(
        kernel,
        out_shape=jax.ShapeDtypeStruct((M_pad, D_pad), x.dtype),
        grid_spec=grid_spec,
        compiler_params=pltpu.CompilerParams(
            dimension_semantics=dim_sem,
            vmem_limit_bytes=vmem_limit),
        cost_estimate=cost,
    )(x2d, w1p, w2p, g2d, b2d)

    return out2d[:M, :D].reshape(B, S, D)


# ------------------------------------------------------------------------------- test


if __name__ == "__main__":
    batch, seq, d_model, d_ffn = 2, 8, 32, 64

    key = jax.random.PRNGKey(0)
    kx, k1, k2, k3, k4 = jax.random.split(key, 5)

    x = jax.random.normal(kx, (batch, seq, d_model), dtype=jnp.float32)
    bound1 = 1.0 / (d_model ** 0.5)
    bound2 = 1.0 / (d_ffn ** 0.5)
    w1 = jax.random.uniform(k1, (d_model, d_ffn), jnp.float32, -bound1, bound1)
    w2 = jax.random.uniform(k2, (d_ffn, d_model), jnp.float32, -bound2, bound2)
    gamma = jnp.ones((d_model,), jnp.float32)   # LayerNorm weight
    beta = jnp.zeros((d_model,), jnp.float32)   # LayerNorm bias

    def reference(x, w1, w2, gamma, beta, eps=1e-5):
        y = jnp.maximum(x @ w1, 0.0) @ w2 + x
        mu = jnp.mean(y, axis=-1, keepdims=True)
        var = jnp.mean((y - mu) ** 2, axis=-1, keepdims=True)
        return (y - mu) / jnp.sqrt(var + eps) * gamma + beta

    ref = reference(x, w1, w2, gamma, beta)

    # 1) Exact f32 MXU path (resident-weights mode).
    out = jax.block_until_ready(
        position_wise_ffn(x, w1, w2, gamma, beta, use_bf16_matmul=False))
    assert out.shape == (batch, seq, d_model)
    assert jnp.allclose(out, ref, atol=1e-4, rtol=1e-4), \
        float(jnp.max(jnp.abs(out - ref)))

    # 2) Default mixed-precision path: bf16 MXU operands, f32 accumulation/LayerNorm.
    out_bf = jax.block_until_ready(
        position_wise_ffn(x, w1, w2, gamma, beta, use_bf16_matmul=True))
    assert jnp.allclose(out_bf, ref, atol=3e-2, rtol=3e-2), \
        float(jnp.max(jnp.abs(out_bf - ref)))

    # 3) Streamed-d_ffn (accumulator) mode with several k steps, exact f32 math.
    d_ffn_big = 384
    w1b = jax.random.uniform(k3, (d_model, d_ffn_big), jnp.float32, -bound1, bound1)
    w2b = jax.random.uniform(k4, (d_ffn_big, d_model), jnp.float32,
                             -1.0 / (d_ffn_big ** 0.5), 1.0 / (d_ffn_big ** 0.5))
    ref_b = reference(x, w1b, w2b, gamma, beta)
    out_b = jax.block_until_ready(
        position_wise_ffn(x, w1b, w2b, gamma, beta, use_bf16_matmul=False,
                          force_streamed=True, block_ffn=128))
    assert jnp.allclose(out_b, ref_b, atol=1e-4, rtol=1e-4), \
        float(jnp.max(jnp.abs(out_b - ref_b)))

    print("KERNEL_OK")
</pallas_src>

<mosaic_0001>
module attributes {stable_mosaic.version = 11 : i64} {
  func.func @kernel(%arg0: i32, %arg1: memref<8x128xf32, #tpu.memory_space<vmem>>, %arg2: memref<128x128xf32, #tpu.memory_space<vmem>>, %arg3: memref<128x128xf32, #tpu.memory_space<vmem>>, %arg4: memref<1x128xf32, #tpu.memory_space<vmem>>, %arg5: memref<1x128xf32, #tpu.memory_space<vmem>>, %arg6: memref<8x128xf32, #tpu.memory_space<vmem>>) attributes {dimension_semantics = [#tpu.dimension_semantics<parallel>], iteration_bounds = array<i64: 2>, scalar_prefetch = 0 : i64, scratch_operands = 0 : i64, tpu.core_type = #tpu.core_type<tc>, window_params = [{transform_indices = @transform_0, window_bounds = array<i64: 8, 128>}, {pipeline_mode = #tpu.pipeline_mode<synchronous>, transform_indices = @transform_1, window_bounds = array<i64: 128, 128>}, {pipeline_mode = #tpu.pipeline_mode<synchronous>, transform_indices = @transform_2, window_bounds = array<i64: 128, 128>}, {pipeline_mode = #tpu.pipeline_mode<synchronous>, transform_indices = @transform_3, window_bounds = array<i64: 1, 128>}, {pipeline_mode = #tpu.pipeline_mode<synchronous>, transform_indices = @transform_4, window_bounds = array<i64: 1, 128>}, {transform_indices = @transform_5, window_bounds = array<i64: 8, 128>}]} {
    %c0 = arith.constant 0 : index
    %c0_0 = arith.constant 0 : index
    %0 = vector.load %arg1[%c0, %c0_0] : memref<8x128xf32, #tpu.memory_space<vmem>>, vector<8x128xf32>
    %c0_1 = arith.constant 0 : index
    %c0_2 = arith.constant 0 : index
    %1 = vector.load %arg2[%c0_1, %c0_2] : memref<128x128xf32, #tpu.memory_space<vmem>>, vector<128x128xf32>
    %cst = arith.constant dense<0.000000e+00> : vector<8x128xf32>
    %2 = tpu.matmul %0, %1, %cst {dimension_numbers = #tpu.dot_dimension_numbers<[1], [0], [0], [1], [0, 0, 1, 1], [], []>} : vector<8x128xf32>, vector<128x128xf32>, vector<8x128xf32> -> vector<8x128xf32>
    %cst_3 = arith.constant 0.000000e+00 : f32
    %3 = vector.broadcast %cst_3 : f32 to vector<8x128xf32>
    %4 = arith.maximumf %2, %3 : vector<8x128xf32>
    %c0_4 = arith.constant 0 : index
    %c0_5 = arith.constant 0 : index
    %5 = vector.load %arg3[%c0_4, %c0_5] : memref<128x128xf32, #tpu.memory_space<vmem>>, vector<128x128xf32>
    %cst_6 = arith.constant dense<0.000000e+00> : vector<8x128xf32>
    %6 = tpu.matmul %4, %5, %cst_6 {dimension_numbers = #tpu.dot_dimension_numbers<[1], [0], [0], [1], [0, 0, 1, 1], [], []>} : vector<8x128xf32>, vector<128x128xf32>, vector<8x128xf32> -> vector<8x128xf32>
    %7 = arith.addf %6, %0 : vector<8x128xf32>
    %c0_7 = arith.constant 0 : index
    %c0_8 = arith.constant 0 : index
    %8 = vector.load %arg4[%c0_7, %c0_8] : memref<1x128xf32, #tpu.memory_space<vmem>>, vector<1x128xf32>
    %c0_9 = arith.constant 0 : index
    %c0_10 = arith.constant 0 : index
    %9 = vector.load %arg5[%c0_9, %c0_10] : memref<1x128xf32, #tpu.memory_space<vmem>>, vector<1x128xf32>
    %cst_11 = arith.constant dense<0.000000e+00> : vector<8xf32>
    %10 = vector.multi_reduction <add>, %7, %cst_11 [1] : vector<8x128xf32> to vector<8xf32>
    %11 = vector.shape_cast %10 : vector<8xf32> to vector<8x1xf32>
    %cst_12 = arith.constant 3.125000e-02 : f32
    %12 = vector.broadcast %cst_12 : f32 to vector<8x1xf32>
    %13 = arith.mulf %11, %12 : vector<8x1xf32>
    %14 = vector.broadcast %13 : vector<8x1xf32> to vector<8x128xf32>
    %15 = arith.subf %7, %14 : vector<8x128xf32>
    %16 = tpu.iota {dimensions = array<i32: 1>} : vector<8x128xi32>
    %c32_i32 = arith.constant 32 : i32
    %17 = vector.broadcast %c32_i32 : i32 to vector<8x128xi32>
    %18 = arith.cmpi slt, %16, %17 : vector<8x128xi32>
    %cst_13 = arith.constant 0.000000e+00 : f32
    %19 = vector.broadcast %cst_13 : f32 to vector<8x128xf32>
    %20 = arith.select %18, %15, %19 : vector<8x128xi1>, vector<8x128xf32>
    %21 = arith.mulf %20, %20 : vector<8x128xf32>
    %cst_14 = arith.constant dense<0.000000e+00> : vector<8xf32>
    %22 = vector.multi_reduction <add>, %21, %cst_14 [1] : vector<8x128xf32> to vector<8xf32>
    %23 = vector.shape_cast %22 : vector<8xf32> to vector<8x1xf32>
    %cst_15 = arith.constant 3.125000e-02 : f32
    %24 = vector.broadcast %cst_15 : f32 to vector<8x1xf32>
    %25 = arith.mulf %23, %24 : vector<8x1xf32>
    %cst_16 = arith.constant 9.99999974E-6 : f32
    %26 = vector.broadcast %cst_16 : f32 to vector<8x1xf32>
    %27 = arith.addf %25, %26 : vector<8x1xf32>
    %28 = math.rsqrt %27 : vector<8x1xf32>
    %29 = vector.broadcast %28 : vector<8x1xf32> to vector<8x128xf32>
    %30 = arith.mulf %20, %29 : vector<8x128xf32>
    %31 = vector.broadcast %8 : vector<1x128xf32> to vector<8x128xf32>
    %32 = arith.mulf %30, %31 : vector<8x128xf32>
    %33 = vector.broadcast %9 : vector<1x128xf32> to vector<8x128xf32>
    %34 = arith.addf %32, %33 : vector<8x128xf32>
    %c0_17 = arith.constant 0 : index
    %c0_18 = arith.constant 0 : index
    %35 = vector.load %arg6[%c0_17, %c0_18] : memref<8x128xf32, #tpu.memory_space<vmem>>, vector<8x128xf32>
    tpu.vector_store %arg6[%c0_17, %c0_18], %34 {strides = array<i32>} : memref<8x128xf32, #tpu.memory_space<vmem>>, vector<8x128xf32>,
    return
  }
  func.func @transform_0(%arg0: i32) -> (i32, i32) {
    %c0_i32 = arith.constant 0 : i32
    %c0_i32_0 = arith.constant 0 : i32
    return %arg0, %c0_i32 : i32, i32
  }
  func.func @transform_1(%arg0: i32) -> (i32, i32) {
    %c0_i32 = arith.constant 0 : i32
    %c0_i32_0 = arith.constant 0 : i32
    %c0_i32_1 = arith.constant 0 : i32
    return %c0_i32, %c0_i32_0 : i32, i32
  }
  func.func @transform_2(%arg0: i32) -> (i32, i32) {
    %c0_i32 = arith.constant 0 : i32
    %c0_i32_0 = arith.constant 0 : i32
    %c0_i32_1 = arith.constant 0 : i32
    return %c0_i32, %c0_i32_0 : i32, i32
  }
  func.func @transform_3(%arg0: i32) -> (i32, i32) {
    %c0_i32 = arith.constant 0 : i32
    %c0_i32_0 = arith.constant 0 : i32
    %c0_i32_1 = arith.constant 0 : i32
    return %c0_i32, %c0_i32_0 : i32, i32
  }
  func.func @transform_4(%arg0: i32) -> (i32, i32) {
    %c0_i32 = arith.constant 0 : i32
    %c0_i32_0 = arith.constant 0 : i32
    %c0_i32_1 = arith.constant 0 : i32
    return %c0_i32, %c0_i32_0 : i32, i32
  }
  func.func @transform_5(%arg0: i32) -> (i32, i32) {
    %c0_i32 = arith.constant 0 : i32
    %c0_i32_0 = arith.constant 0 : i32
    return %arg0, %c0_i32 : i32, i32
  }
}

</mosaic_0001>

<llo_original>
// kernel: position_wise_ffn.1
$region0: #{position_wise_ffn.1}
  #allocation0 [shape = 'u32[]', space=smem, size = 0x4, offset = 0x4, fixed_abs, tag = 'smem constant byte address 0x4 - core index']
  #allocation1 [shape = 'u32[144,128]{1,0:T(1,128)}', space=vmem, size = 0x12000, scoped, tag = 'internal scratch']
  %s0 = inlined_call_operand.vmem [shape: f32[16,128], index: 0, kind: input, shape index: {}]
  %s1 = inlined_call_operand.vmem [shape: f32[128,128], index: 1, kind: input, shape index: {}]
  %s2 = inlined_call_operand.vmem [shape: f32[128,128], index: 2, kind: input, shape index: {}]
  %s3 = inlined_call_operand.vmem [shape: f32[1,128], index: 3, kind: input, shape index: {}]
  %s4 = inlined_call_operand.vmem [shape: f32[1,128], index: 4, kind: input, shape index: {}]
  %s5 = inlined_call_operand.vmem [shape: f32[16,128], index: 5, kind: output, shape index: {}]
  %s6 = sld [smem:[#allocation0]]
  $region53: #{position_wise_ffn.1} parent=0
    _
  %s8 = ssub.s32 1, %s6
  %s9 = scalar_select 0, %s8, %s6
  loop: start=0, step=1, limit=4
  $region2: #{position_wise_ffn.1} parent=0 // loop_pre_header
    _
  $region3: #{position_wise_ffn.1} parent=0 // loop_header
    %s11 = sphi 0, %s15
    %p12 = scmp.ge.s32.totalorder %s11, 4
    %s21 = sphi 0, %s23
    %s24 = sphi 0, %s21
    %s25 = sphi 0, %s24
    %s41 = sphi 0, %s25
    %s45 = sphi 0, %s45
    %s47 = sphi 0, %s45
    %s48 = sphi 0, %s47
    %s62 = sphi 0, %s48
    %s66 = sphi 0, %s66
    %s68 = sphi 0, %s66
    %s69 = sphi 0, %s68
    %s83 = sphi 0, %s69
    %s87 = sphi 0, %s87
    %s89 = sphi 0, %s87
    %s90 = sphi 0, %s89
    %s104 = sphi 0, %s90
    %s108 = sphi 0, %s108
    %s110 = sphi 0, %s108
    %s111 = sphi 0, %s110
    %s125 = sphi 0, %s111
    %s131 = sphi 0, %s133
    %s134 = sphi 0, %s131
    %s135 = sphi 0, %s134
    %s151 = sphi 0, %s135
  $region4: #{position_wise_ffn.1} parent=0 // loop_header_branch
    %14 = sbr.rel (%p12) target = $region8
  $region5: #{position_wise_ffn.1} parent=0 // loop_body
    %s16 = ssub.s32 %s11, 1
    %s17 = ssub.s32 %s11, 2
    %s18 = sadd.s32 %s11, 1
    %s19 = ssub.s32 %s11, %s18
    %p20 = scmp.eq.s32.totalorder %s19, 0
    %s22 = sadd.s32 %s21, 1
    %s23 = scalar_select %p20, %s21, %s22
    %p26 = pneg %p20
    %p27 = scmp.eq.s32.totalorder %s11, 1
    %p28 = por %p26, %p27
    %p29 = scmp.ne.s32.totalorder %s21, %s24
    %p30 = scmp.eq.s32.totalorder %s11, 0
    %p31 = por %p29, %p30
    %p32 = scmp.ne.s32.totalorder %s21, %s24
    %p33 = scmp.eq.s32.totalorder %s16, 1
    %p34 = por %p32, %p33
    %p35 = scmp.ne.s32.totalorder %s24, %s25
    %p36 = scmp.eq.s32.totalorder %s16, 0
    %p37 = por %p35, %p36
    %p38 = scmp.ne.s32.totalorder %s24, %s25
    %p39 = scmp.eq.s32.totalorder %s17, 1
    %p40 = por %p38, %p39
    %p42 = scmp.ne.s32.totalorder %s25, %s41
    %p43 = scmp.eq.s32.totalorder %s17, 0
    %p44 = por %p42, %p43
    %s46 = sadd.s32 %s45, 1
    %p49 = scmp.eq.s32.totalorder %s11, 1
    %p50 = scmp.ne.s32.totalorder %s45, %s47
    %p51 = scmp.eq.s32.totalorder %s11, 0
    %p52 = por %p50, %p51
    %p53 = scmp.ne.s32.totalorder %s45, %s47
    %p54 = scmp.eq.s32.totalorder %s16, 1
    %p55 = por %p53, %p54
    %p56 = scmp.ne.s32.totalorder %s47, %s48
    %p57 = scmp.eq.s32.totalorder %s16, 0
    %p58 = por %p56, %p57
    %p59 = scmp.ne.s32.totalorder %s47, %s48
    %p60 = scmp.eq.s32.totalorder %s17, 1
    %p61 = por %p59, %p60
    %p63 = scmp.ne.s32.totalorder %s48, %s62
    %p64 = scmp.eq.s32.totalorder %s17, 0
    %p65 = por %p63, %p64
    %s67 = sadd.s32 %s66, 1
    %p70 = scmp.eq.s32.totalorder %s11, 1
    %p71 = scmp.ne.s32.totalorder %s66, %s68
    %p72 = scmp.eq.s32.totalorder %s11, 0
    %p73 = por %p71, %p72
    %p74 = scmp.ne.s32.totalorder %s66, %s68
    %p75 = scmp.eq.s32.totalorder %s16, 1
    %p76 = por %p74, %p75
    %p77 = scmp.ne.s32.totalorder %s68, %s69
    %p78 = scmp.eq.s32.totalorder %s16, 0
    %p79 = por %p77, %p78
    %p80 = scmp.ne.s32.totalorder %s68, %s69
    %p81 = scmp.eq.s32.totalorder %s17, 1
    %p82 = por %p80, %p81
    %p84 = scmp.ne.s32.totalorder %s69, %s83
    %p85 = scmp.eq.s32.totalorder %s17, 0
    %p86 = por %p84, %p85
    %s88 = sadd.s32 %s87, 1
    %p91 = scmp.eq.s32.totalorder %s11, 1
    %p92 = scmp.ne.s32.totalorder %s87, %s89
    %p93 = scmp.eq.s32.totalorder %s11, 0
    %p94 = por %p92, %p93
    %p95 = scmp.ne.s32.totalorder %s87, %s89
    %p96 = scmp.eq.s32.totalorder %s16, 1
    %p97 = por %p95, %p96
    %p98 = scmp.ne.s32.totalorder %s89, %s90
    %p99 = scmp.eq.s32.totalorder %s16, 0
    %p100 = por %p98, %p99
    %p101 = scmp.ne.s32.totalorder %s89, %s90
    %p102 = scmp.eq.s32.totalorder %s17, 1
    %p103 = por %p101, %p102
    %p105 = scmp.ne.s32.totalorder %s90, %s104
    %p106 = scmp.eq.s32.totalorder %s17, 0
    %p107 = por %p105, %p106
    %s109 = sadd.s32 %s108, 1
    %p112 = scmp.eq.s32.totalorder %s11, 1
    %p113 = scmp.ne.s32.totalorder %s108, %s110
    %p114 = scmp.eq.s32.totalorder %s11, 0
    %p115 = por %p113, %p114
    %p116 = scmp.ne.s32.totalorder %s108, %s110
    %p117 = scmp.eq.s32.totalorder %s16, 1
    %p118 = por %p116, %p117
    %p119 = scmp.ne.s32.totalorder %s110, %s111
    %p120 = scmp.eq.s32.totalorder %s16, 0
    %p121 = por %p119, %p120
    %p122 = scmp.ne.s32.totalorder %s110, %s111
    %p123 = scmp.eq.s32.totalorder %s17, 1
    %p124 = por %p122, %p123
    %p126 = scmp.ne.s32.totalorder %s111, %s125
    %p127 = scmp.eq.s32.totalorder %s17, 0
    %p128 = por %p126, %p127
    %s129 = ssub.s32 %s11, %s18
    %p130 = scmp.eq.s32.totalorder %s129, 0
    %s132 = sadd.s32 %s131, 1
    %s133 = scalar_select %p130, %s131, %s132
    %p136 = pneg %p130
    %p137 = scmp.eq.s32.totalorder %s11, 1
    %p138 = por %p136, %p137
    %p139 = scmp.ne.s32.totalorder %s131, %s134
    %p140 = scmp.eq.s32.totalorder %s11, 0
    %p141 = por %p139, %p140
    %p142 = scmp.ne.s32.totalorder %s131, %s134
    %p143 = scmp.eq.s32.totalorder %s16, 1
    %p144 = por %p142, %p143
    %p145 = scmp.ne.s32.totalorder %s134, %s135
    %p146 = scmp.eq.s32.totalorder %s16, 0
    %p147 = por %p145, %p146
    %p148 = scmp.ne.s32.totalorder %s134, %s135
    %p149 = scmp.eq.s32.totalorder %s17, 1
    %p150 = por %p148, %p149
    %p152 = scmp.ne.s32.totalorder %s135, %s151
    %p153 = scmp.eq.s32.totalorder %s17, 0
    %p154 = por %p152, %p153
    %p155 = scmp.le.s32.totalorder 1, %s11
    %p156 = scmp.lt.s32.totalorder %s11, 3
    %p157 = pnand %p155, %p156
    %p158 = pneg %p157
    // Predicated region
    $region9: #{position_wise_ffn.1} parent=5 // pred_check
      _
    $region10: #{position_wise_ffn.1} parent=5 // pred_check_branch
      %160 = sbr.rel (%p157) target = $region12
    $region11: #{position_wise_ffn.1} parent=5 // pred_region
      %s161 = ssub.s32 %s11, 1
      // Predicated region
      $region13: #{position_wise_ffn.1} parent=11 // pred_check
        %p162 = pneg %p58
      $region14: #{position_wise_ffn.1} parent=11 // pred_check_branch
        %164 = sbr.rel (%p162) target = $region16
      $region15: #{position_wise_ffn.1} parent=11 // pred_region
        _
      $region16: #{position_wise_ffn.1} parent=11 // pred_fallthru
        _
      // Predicated region
      $region17: #{position_wise_ffn.1} parent=11 // pred_check
        %p165 = pneg %p79
      $region18: #{position_wise_ffn.1} parent=11 // pred_check_branch
        %167 = sbr.rel (%p165) target = $region20
      $region19: #{position_wise_ffn.1} parent=11 // pred_region
        _
      $region20: #{position_wise_ffn.1} parent=11 // pred_fallthru
        _
      // Predicated region
      $region21: #{position_wise_ffn.1} parent=11 // pred_check
        %p168 = pneg %p100
      $region22: #{position_wise_ffn.1} parent=11 // pred_check_branch
        %170 = sbr.rel (%p168) target = $region24
      $region23: #{position_wise_ffn.1} parent=11 // pred_region
        _
      $region24: #{position_wise_ffn.1} parent=11 // pred_fallthru
        _
      // Predicated region
      $region25: #{position_wise_ffn.1} parent=11 // pred_check
        %p171 = pneg %p121
      $region26: #{position_wise_ffn.1} parent=11 // pred_check_branch
        %173 = sbr.rel (%p171) target = $region28
      $region27: #{position_wise_ffn.1} parent=11 // pred_region
        _
      $region28: #{position_wise_ffn.1} parent=11 // pred_fallthru
        _
    $region12: #{position_wise_ffn.1} parent=5 // pred_fallthru
      _
    %p174 = scmp.lt.s32.totalorder %s11, 2
    // Predicated region
    $region29: #{position_wise_ffn.1} parent=5 // pred_check
      %p175 = pneg %p174
    $region30: #{position_wise_ffn.1} parent=5 // pred_check_branch
      %177 = sbr.rel (%p175) target = $region32
    $region31: #{position_wise_ffn.1} parent=5 // pred_region
      // Predicated region
      $region33: #{position_wise_ffn.1} parent=31 // pred_check
        %p178 = pneg %p31
      $region34: #{position_wise_ffn.1} parent=31 // pred_check_branch
        %180 = sbr.rel (%p178) target = $region36
      $region35: #{position_wise_ffn.1} parent=31 // pred_region
        %p181 = scmp.lt.s32.totalorder %s11, 1
        %s182 = scalar_select %p181, %s11, 1
        %s183 = smul.addr %s182, 8
        %s184 = scalar_lea.vmem %s0, %s183
      $region36: #{position_wise_ffn.1} parent=31 // pred_fallthru
        _
    $region32: #{position_wise_ffn.1} parent=5 // pred_fallthru
      _
    %p185 = scmp.le.s32.totalorder 1, %s11
    %p186 = scmp.lt.s32.totalorder %s11, 3
    %p187 = pnand %p185, %p186
    %p188 = pneg %p187
    // Predicated region
    $region37: #{position_wise_ffn.1} parent=5 // pred_check
      _
    $region38: #{position_wise_ffn.1} parent=5 // pred_check_branch
      %190 = sbr.rel (%p187) target = $region40
    $region39: #{position_wise_ffn.1} parent=5 // pred_region
      %s191 = ssub.s32 %s11, 1
      %p192 = scmp.lt.s32.totalorder %s16, 1
      %s193 = scalar_select %p192, %s16, 1
      %s194 = smul.addr %s193, 8
      %s195 = scalar_lea.vmem %s0, %s194
      %p196 = pneg %p37
      %p197 = pneg %p34
      %p198 = pneg %p58
      %p199 = pneg %p55
      %p200 = pneg %p79
      %p201 = pneg %p76
      %p202 = pneg %p100
      %p203 = pneg %p97
      %p204 = pneg %p121
      %p205 = pneg %p118
      %p206 = pneg %p147
      %p207 = pneg %p144
      %p208 = scmp.lt.s32.totalorder %s16, 1
      %s209 = scalar_select %p208, %s16, 1
      %s210 = smul.addr %s209, 8
      %s211 = scalar_lea.vmem %s5, %s210
      %p212 = scmp.lt.s32.totalorder %s16, 1
      %s213 = scalar_select %p212, %s16, 1
      %s214 = smul.addr %s213, 8
      %s215 = scalar_lea.vmem %s0, %s214
      %p216 = scmp.lt.s32.totalorder %s16, 1
      %s217 = scalar_select %p216, %s16, 1
      %s218 = smul.addr %s217, 8
      %s219 = scalar_lea.vmem %s5, %s218
      %v220 = vld [vmem:[%s215] sm:$0xff]
      %v221 = vld [vmem:[%s1] sm:$0xff]
      %v222 = vld [vmem:[%s1 + $0x8] sm:$0xff]
      %v223 = vld [vmem:[%s1 + $0x10] sm:$0xff]
      %v224 = vld [vmem:[%s1 + $0x18] sm:$0xff]
      %v225 = vld [vmem:[%s1 + $0x20] sm:$0xff]
      %v226 = vld [vmem:[%s1 + $0x28] sm:$0xff]
      %v227 = vld [vmem:[%s1 + $0x30] sm:$0xff]
      %v228 = vld [vmem:[%s1 + $0x38] sm:$0xff]
      %v229 = vld [vmem:[%s1 + $0x40] sm:$0xff]
      %v230 = vld [vmem:[%s1 + $0x48] sm:$0xff]
      %v231 = vld [vmem:[%s1 + $0x50] sm:$0xff]
      %v232 = vld [vmem:[%s1 + $0x58] sm:$0xff]
      %v233 = vld [vmem:[%s1 + $0x60] sm:$0xff]
      %v234 = vld [vmem:[%s1 + $0x68] sm:$0xff]
      %v235 = vld [vmem:[%s1 + $0x70] sm:$0xff]
      %v236 = vld [vmem:[%s1 + $0x78] sm:$0xff]
      %237 = vmatprep.subr.mxu0 0.0
      %238 = vmatpush1.msra.mxu0 %v236
      %239 = vmatprep.subr.mxu0 0.0
      %240 = vmatpush1.msra.mxu0 %v235
      %241 = vmatprep.subr.mxu0 0.0
      %242 = vmatpush1.msra.mxu0 %v234
      %243 = vmatprep.subr.mxu0 0.0
      %244 = vmatpush1.msra.mxu0 %v233
      %245 = vmatprep.subr.mxu0 0.0
      %246 = vmatpush1.msra.mxu0 %v232
      %247 = vmatprep.subr.mxu0 0.0
      %248 = vmatpush1.msra.mxu0 %v231
      %249 = vmatprep.subr.mxu0 0.0
      %250 = vmatpush1.msra.mxu0 %v230
      %251 = vmatprep.subr.mxu0 0.0
      %252 = vmatpush1.msra.mxu0 %v229
      %253 = vmatprep.subr.mxu0 0.0
      %254 = vmatpush1.msra.mxu0 %v228
      %255 = vmatprep.subr.mxu0 0.0
      %256 = vmatpush1.msra.mxu0 %v227
      %257 = vmatprep.subr.mxu0 0.0
      %258 = vmatpush1.msra.mxu0 %v226
      %259 = vmatprep.subr.mxu0 0.0
      %260 = vmatpush1.msra.mxu0 %v225
      %261 = vmatprep.subr.mxu0 0.0
      %262 = vmatpush1.msra.mxu0 %v224
      %263 = vmatprep.subr.mxu0 0.0
      %264 = vmatpush1.msra.mxu0 %v223
      %265 = vmatprep.subr.mxu0 0.0
      %266 = vmatpush1.msra.mxu0 %v222
      %267 = vmatprep.subr.mxu0 0.0
      %268 = vmatpush1.msra.mxu0 %v221
      %269 = vmatprep.subr.mxu0 0.0
      %270 = vmatpush2.msra.mxu0 0.0
      %271 = vmatprep.subr.mxu0 0.0
      %272 = vmatpush2.msra.mxu0 0.0
      %273 = vmatprep.subr.mxu0 0.0
      %274 = vmatpush2.msra.mxu0 0.0
      %275 = vmatprep.subr.mxu0 0.0
      %276 = vmatpush2.msra.mxu0 0.0
      %277 = vmatprep.subr.mxu0 0.0
      %278 = vmatpush2.msra.mxu0 0.0
      %279 = vmatprep.subr.mxu0 0.0
      %280 = vmatpush2.msra.mxu0 0.0
      %281 = vmatprep.subr.mxu0 0.0
      %282 = vmatpush2.msra.mxu0 0.0
      %283 = vmatprep.subr.mxu0 0.0
      %284 = vmatpush2.msra.mxu0 0.0
      %285 = vmatprep.subr.mxu0 0.0
      %286 = vmatpush2.msra.mxu0 0.0
      %287 = vmatprep.subr.mxu0 0.0
      %288 = vmatpush2.msra.mxu0 0.0
      %289 = vmatprep.subr.mxu0 0.0
      %290 = vmatpush2.msra.mxu0 0.0
      %291 = vmatprep.subr.mxu0 0.0
      %292 = vmatpush2.msra.mxu0 0.0
      %293 = vmatprep.subr.mxu0 0.0
      %294 = vmatpush2.msra.mxu0 0.0
      %295 = vmatprep.subr.mxu0 0.0
      %296 = vmatpush2.msra.mxu0 0.0
      %297 = vmatprep.subr.mxu0 0.0
      %298 = vmatpush2.msra.mxu0 0.0
      %299 = vmatprep.subr.mxu0 0.0
      %300 = vmatpush2.msra.mxu0 0.0
      %301 = vmatprep.mubr.f32.mxu0 0.0
      %302 = vmatmul.mubr.f32.gmra.mxu0 %v220
      %v303 = vpop.f32.mrf.mxu0
      %v304 = vadd.f32 0.0, %v303
      %v305 = vpop.f32.mrf.mxu0
      %306 = vdwg.mxu0
      %v307 = vmax.f32 %v304, 0.0
      %v308 = vld [vmem:[%s2] sm:$0xff]
      %v309 = vld [vmem:[%s2 + $0x8] sm:$0xff]
      %v310 = vld [vmem:[%s2 + $0x10] sm:$0xff]
      %v311 = vld [vmem:[%s2 + $0x18] sm:$0xff]
      %v312 = vld [vmem:[%s2 + $0x20] sm:$0xff]
      %v313 = vld [vmem:[%s2 + $0x28] sm:$0xff]
      %v314 = vld [vmem:[%s2 + $0x30] sm:$0xff]
      %v315 = vld [vmem:[%s2 + $0x38] sm:$0xff]
      %v316 = vld [vmem:[%s2 + $0x40] sm:$0xff]
      %v317 = vld [vmem:[%s2 + $0x48] sm:$0xff]
      %v318 = vld [vmem:[%s2 + $0x50] sm:$0xff]
      %v319 = vld [vmem:[%s2 + $0x58] sm:$0xff]
      %v320 = vld [vmem:[%s2 + $0x60] sm:$0xff]
      %v321 = vld [vmem:[%s2 + $0x68] sm:$0xff]
      %v322 = vld [vmem:[%s2 + $0x70] sm:$0xff]
      %v323 = vld [vmem:[%s2 + $0x78] sm:$0xff]
      %324 = vmatprep.subr.mxu0 0.0
      %325 = vmatpush1.msra.mxu0 %v323
      %326 = vmatprep.subr.mxu0 0.0
      %327 = vmatpush1.msra.mxu0 %v322
      %328 = vmatprep.subr.mxu0 0.0
      %329 = vmatpush1.msra.mxu0 %v321
      %330 = vmatprep.subr.mxu0 0.0
      %331 = vmatpush1.msra.mxu0 %v320
      %332 = vmatprep.subr.mxu0 0.0
      %333 = vmatpush1.msra.mxu0 %v319
      %334 = vmatprep.subr.mxu0 0.0
      %335 = vmatpush1.msra.mxu0 %v318
      %336 = vmatprep.subr.mxu0 0.0
      %337 = vmatpush1.msra.mxu0 %v317
      %338 = vmatprep.subr.mxu0 0.0
      %339 = vmatpush1.msra.mxu0 %v316
      %340 = vmatprep.subr.mxu0 0.0
      %341 = vmatpush1.msra.mxu0 %v315
      %342 = vmatprep.subr.mxu0 0.0
      %343 = vmatpush1.msra.mxu0 %v314
      %344 = vmatprep.subr.mxu0 0.0
      %345 = vmatpush1.msra.mxu0 %v313
      %346 = vmatprep.subr.mxu0 0.0
      %347 = vmatpush1.msra.mxu0 %v312
      %348 = vmatprep.subr.mxu0 0.0
      %349 = vmatpush1.msra.mxu0 %v311
      %350 = vmatprep.subr.mxu0 0.0
      %351 = vmatpush1.msra.mxu0 %v310
      %352 = vmatprep.subr.mxu0 0.0
      %353 = vmatpush1.msra.mxu0 %v309
      %354 = vmatprep.subr.mxu0 0.0
      %355 = vmatpush1.msra.mxu0 %v308
      %356 = vmatprep.subr.mxu0 0.0
      %357 = vmatpush2.msra.mxu0 0.0
      %358 = vmatprep.subr.mxu0 0.0
      %359 = vmatpush2.msra.mxu0 0.0
      %360 = vmatprep.subr.mxu0 0.0
      %361 = vmatpush2.msra.mxu0 0.0
      %362 = vmatprep.subr.mxu0 0.0
      %363 = vmatpush2.msra.mxu0 0.0
      %364 = vmatprep.subr.mxu0 0.0
      %365 = vmatpush2.msra.mxu0 0.0
      %366 = vmatprep.subr.mxu0 0.0
      %367 = vmatpush2.msra.mxu0 0.0
      %368 = vmatprep.subr.mxu0 0.0
      %369 = vmatpush2.msra.mxu0 0.0
      %370 = vmatprep.subr.mxu0 0.0
      %371 = vmatpush2.msra.mxu0 0.0
      %372 = vmatprep.subr.mxu0 0.0
      %373 = vmatpush2.msra.mxu0 0.0
      %374 = vmatprep.subr.mxu0 0.0
      %375 = vmatpush2.msra.mxu0 0.0
      %376 = vmatprep.subr.mxu0 0.0
      %377 = vmatpush2.msra.mxu0 0.0
      %378 = vmatprep.subr.mxu0 0.0
      %379 = vmatpush2.msra.mxu0 0.0
      %380 = vmatprep.subr.mxu0 0.0
      %381 = vmatpush2.msra.mxu0 0.0
      %382 = vmatprep.subr.mxu0 0.0
      %383 = vmatpush2.msra.mxu0 0.0
      %384 = vmatprep.subr.mxu0 0.0
      %385 = vmatpush2.msra.mxu0 0.0
      %386 = vmatprep.subr.mxu0 0.0
      %387 = vmatpush2.msra.mxu0 0.0
      %388 = vmatprep.mubr.f32.mxu0 0.0
      %389 = vmatmul.mubr.f32.gmra.mxu0 %v307
      %v390 = vpop.f32.mrf.mxu0
      %v391 = vadd.f32 %v220, %v390
      %v392 = vpop.f32.mrf.mxu0
      %393 = vdwg.mxu0
      %v394 = vld [vmem:[%s3] sm:$0x1]
      %v395 = vld [vmem:[%s4] sm:$0x1]
      %396 = vadd.xlane.f32.xlu0 %v391
      %v397 = vpop.xlane.xlu0 %396
      %v398 = vmul.f32 %v397, 0.03125
      %v399 = vsub.f32 %v391, %v398
      %v400 = vlaneseq
      %v401 = vand.u32 %v400, 127
      %vm402 = vcmp.lt.s32.totalorder %v401, 32
      %v403 = vsel %vm402, %v399, 0.0
      %v404 = vmul.f32 %v403, %v403
      %405 = vadd.xlane.f32.xlu0 %v404
      %v406 = vpop.xlane.xlu0 %405
      %v407 = vmul.f32 %v406, 0.03125
      %v408 = vadd.f32 %v407, 1e-05
      %v409 = vrsqrt.pop %v408
      %v410 = vmul.f32 %v403, %v409
      %v412 = vlaneseq
      %v413 = vshrl.u32 %v412, 7
      %v414 = vsub.s32 0, %v413
      %v415 = vrot.slane %v394, %v414
      %v417 = vmul.f32 %v410, %v415
      %v419 = vlaneseq
      %v420 = vshrl.u32 %v419, 7
      %v421 = vsub.s32 0, %v420
      %v422 = vrot.slane %v395, %v421
      %v424 = vadd.f32 %v417, %v422
      %425 = vst [vmem:[%s219] sm:$0xff] %v424
      %p426 = scmp.lt.s32.totalorder %s16, 1
      %s427 = scalar_select %p426, %s16, 1
      %s428 = smul.addr %s427, 8
      %s429 = scalar_lea.vmem %s5, %s428
      // Predicated region
      $region41: #{position_wise_ffn.1} parent=39 // pred_check
        %p430 = pneg %p144
      $region42: #{position_wise_ffn.1} parent=39 // pred_check_branch
        %432 = sbr.rel (%p430) target = $region44
      $region43: #{position_wise_ffn.1} parent=39 // pred_region
        _
      $region44: #{position_wise_ffn.1} parent=39 // pred_fallthru
        _
    $region40: #{position_wise_ffn.1} parent=5 // pred_fallthru
      _
    %p433 = scmp.le.s32.totalorder 2, %s11
    // Predicated region
    $region45: #{position_wise_ffn.1} parent=5 // pred_check
      %p434 = pneg %p433
    $region46: #{position_wise_ffn.1} parent=5 // pred_check_branch
      %436 = sbr.rel (%p434) target = $region48
    $region47: #{position_wise_ffn.1} parent=5 // pred_region
      %s437 = ssub.s32 %s11, 2
      // Predicated region
      $region49: #{position_wise_ffn.1} parent=47 // pred_check
        %p438 = pneg %p150
      $region50: #{position_wise_ffn.1} parent=47 // pred_check_branch
        %440 = sbr.rel (%p438) target = $region52
      $region51: #{position_wise_ffn.1} parent=47 // pred_region
        %p441 = scmp.lt.s32.totalorder %s17, 1
        %s442 = scalar_select %p441, %s17, 1
        %s443 = smul.addr %s442, 8
        %s444 = scalar_lea.vmem %s5, %s443
      $region52: #{position_wise_ffn.1} parent=47 // pred_fallthru
        _
    $region48: #{position_wise_ffn.1} parent=5 // pred_fallthru
      _
  $region6: #{position_wise_ffn.1} parent=0 // loop_footer
    %s15 = sadd.s32 1, %s11
  $region7: #{position_wise_ffn.1} parent=0 // loop_footer_branch
    %10 = sbr.rel target = $region3
  $region8: #{position_wise_ffn.1} parent=0 // loop_exit
    _

</llo_original>
